<compile_context>
chip_gen: v5e
topology: v5e:2x2
jax: 0.10.0
libtpu: 0.0.40
codegen_flags: <defaults>
</compile_context>

<pallas_src>
import jax
import jax.numpy as jnp
from jax.experimental import pallas as pl
from jax.experimental.pallas import tpu as pltpu


def _round_up(x: int, m: int) -> int:
    return ((x + m - 1) // m) * m


def mlp_policy_kernel(obs_ref, eps_ref, w1_ref, b1_ref, w2_ref, b2_ref,
                      w3_ref, b3_ref, std_ref, out_ref):
    # hidden layer 1: Linear + Tanh   (MXU dot, f32 accumulate, f32 elementwise)
    h = jnp.tanh(
        jnp.dot(obs_ref[...], w1_ref[...], preferred_element_type=jnp.float32)
        + b1_ref[...]
    )
    # hidden layer 2: Linear + Tanh
    h = jnp.tanh(
        jnp.dot(h.astype(w2_ref.dtype), w2_ref[...],
                preferred_element_type=jnp.float32)
        + b2_ref[...]
    )
    # output layer: Linear (no activation) -> mean
    mean = (
        jnp.dot(h.astype(w3_ref.dtype), w3_ref[...],
                preferred_element_type=jnp.float32)
        + b3_ref[...]
    )
    # rsample: mean + exp(logstd) * eps   (exp(logstd) hoisted into prepare_params)
    out_ref[...] = mean + std_ref[...] * eps_ref[...]


def prepare_params(params, dtype=jnp.float32):
    """One-time parameter prep; call once and reuse across forward calls.

    * weights kept in (in, out) layout so the kernel computes x @ W + b
    * std = exp(logstd) hoisted out of the kernel (batch-independent)
    * weights optionally cast to bf16 (halves weight VMEM and the obs stream
      when obs is matched); biases / std stay f32 for exact elementwise math.
    """
    return dict(
        w1=params["w1"].astype(dtype),
        b1=params["b1"].astype(jnp.float32),
        w2=params["w2"].astype(dtype),
        b2=params["b2"].astype(jnp.float32),
        w3=params["w3"].astype(dtype),
        b3=params["b3"].astype(jnp.float32),
        std=jnp.exp(params["logstd"].astype(jnp.float32)),
    )


def mlp_policy_forward(obs, prepared, eps, *, block_b: int = 1024):
    """MLPPolicySL forward (action sample) via a single fused Pallas kernel.

    obs:      (B, ob_dim) float
    prepared: output of prepare_params()
    eps:      (B, ac_dim) float32 standard-normal noise
    returns action: (B, ac_dim) float32
    """
    w1, b1 = prepared["w1"], prepared["b1"]
    w2, b2 = prepared["w2"], prepared["b2"]
    w3, b3 = prepared["w3"], prepared["b3"]
    std = prepared["std"]

    B, ob_dim = obs.shape
    size = w1.shape[1]
    ac_dim = w3.shape[1]

    obs = obs.astype(w1.dtype)          # match weight dtype for the MXU
    eps = eps.astype(jnp.float32)

    # Batch tiling: multiple of 8 (f32 sublane), sized so padded batch ~= B.
    n_blocks = pl.cdiv(B, block_b)
    tb = _round_up(pl.cdiv(B, n_blocks), 8)
    b_pad = n_blocks * tb
    if b_pad != B:                      # at most tb-1 padded rows total
        obs = jnp.pad(obs, ((0, b_pad - B), (0, 0)))
        eps = jnp.pad(eps, ((0, b_pad - B), (0, 0)))

    out = pl.pallas_call(
        mlp_policy_kernel,
        out_shape=jax.ShapeDtypeStruct((b_pad, ac_dim), jnp.float32),
        grid_spec=pl.GridSpec(
            grid=(n_blocks,),
            in_specs=[
                # batch-tiled streams (double-buffered by the pipeline)
                pl.BlockSpec((tb, ob_dim), lambda i: (i, 0)),
                pl.BlockSpec((tb, ac_dim), lambda i: (i, 0)),
                # weights / biases / std: constant index_map -> VMEM-resident
                pl.BlockSpec((ob_dim, size), lambda i: (0, 0)),
                pl.BlockSpec((1, size), lambda i: (0, 0)),
                pl.BlockSpec((size, size), lambda i: (0, 0)),
                pl.BlockSpec((1, size), lambda i: (0, 0)),
                pl.BlockSpec((size, ac_dim), lambda i: (0, 0)),
                pl.BlockSpec((1, ac_dim), lambda i: (0, 0)),
                pl.BlockSpec((1, ac_dim), lambda i: (0, 0)),
            ],
            out_specs=pl.BlockSpec((tb, ac_dim), lambda i: (i, 0)),
        ),
        compiler_params=pltpu.CompilerParams(
            dimension_semantics=("parallel",),   # shards batch across TCs on v7x
            vmem_limit_bytes=32 * 1024 * 1024,   # safe on v7x's 64 MiB VMEM
        ),
    )(obs, eps, w1, b1, w2, b2, w3, b3, std)

    return out[:B] if b_pad != B else out


def init_params(key, ob_dim, ac_dim, size):
    """Deterministic init mirroring build_mlp(ob_dim, ac_dim, n_layers=2, size).

    PyTorch Linear default init is U(-1/sqrt(fan_in), 1/sqrt(fan_in)); replicated
    distributionally (synthetic weights, not a checkpoint).  Weights stored as
    (in, out) for the x @ W convention.
    """
    def linear(k, fan_in, fan_out):
        kw, kb = jax.random.split(k)
        bound = 1.0 / jnp.sqrt(jnp.float32(fan_in))
        w = jax.random.uniform(kw, (fan_in, fan_out), jnp.float32, -bound, bound)
        b = jax.random.uniform(kb, (1, fan_out), jnp.float32, -bound, bound)
        return w, b

    k1, k2, k3 = jax.random.split(key, 3)
    w1, b1 = linear(k1, ob_dim, size)
    w2, b2 = linear(k2, size, size)
    w3, b3 = linear(k3, size, ac_dim)
    logstd = jnp.zeros((1, ac_dim), jnp.float32)  # nn.Parameter(torch.zeros(ac_dim))
    return dict(w1=w1, b1=b1, w2=w2, b2=b2, w3=w3, b3=b3, logstd=logstd)


if __name__ == "__main__":
    # Small shapes consistent with the module: ob_dim observations -> ac_dim actions,
    # n_layers=2 hidden layers of width `size`.
    B, OB_DIM, AC_DIM, SIZE = 8, 16, 4, 32

    key = jax.random.PRNGKey(0)
    k_obs, k_params, k_eps = jax.random.split(key, 3)

    obs = jax.random.normal(k_obs, (B, OB_DIM), jnp.float32)
    params = init_params(k_params, OB_DIM, AC_DIM, SIZE)
    eps = jax.random.normal(k_eps, (B, AC_DIM), jnp.float32)

    # One-time prep (exp(logstd), dtype casts); reused across forward calls.
    prepared = prepare_params(params, dtype=jnp.float32)

    action = mlp_policy_forward(obs, prepared, eps)
    jax.block_until_ready(action)

    # Pure-JAX reference of the same forward pass (same default TPU matmul precision).
    h = jnp.tanh(obs @ params["w1"] + params["b1"])
    h = jnp.tanh(h @ params["w2"] + params["b2"])
    mean = h @ params["w3"] + params["b3"]
    ref = mean + jnp.exp(params["logstd"]) * eps
    assert action.shape == (B, AC_DIM)
    assert jnp.allclose(action, ref, atol=1e-5, rtol=1e-5), "mismatch vs reference"

    print("KERNEL_OK")
</pallas_src>

<mosaic_0001>
module attributes {stable_mosaic.version = 11 : i64} {
  func.func @mlp_policy_kernel(%arg0: i32, %arg1: memref<8x16xf32, #tpu.memory_space<vmem>>, %arg2: memref<8x4xf32, #tpu.memory_space<vmem>>, %arg3: memref<16x32xf32, #tpu.memory_space<vmem>>, %arg4: memref<1x32xf32, #tpu.memory_space<vmem>>, %arg5: memref<32x32xf32, #tpu.memory_space<vmem>>, %arg6: memref<1x32xf32, #tpu.memory_space<vmem>>, %arg7: memref<32x4xf32, #tpu.memory_space<vmem>>, %arg8: memref<1x4xf32, #tpu.memory_space<vmem>>, %arg9: memref<1x4xf32, #tpu.memory_space<vmem>>, %arg10: memref<8x4xf32, #tpu.memory_space<vmem>>) attributes {dimension_semantics = [#tpu.dimension_semantics<parallel>], iteration_bounds = array<i64: 1>, scalar_prefetch = 0 : i64, scratch_operands = 0 : i64, tpu.core_type = #tpu.core_type<tc>, window_params = [{transform_indices = @transform_0, window_bounds = array<i64: 8, 16>}, {transform_indices = @transform_1, window_bounds = array<i64: 8, 4>}, {pipeline_mode = #tpu.pipeline_mode<synchronous>, transform_indices = @transform_2, window_bounds = array<i64: 16, 32>}, {pipeline_mode = #tpu.pipeline_mode<synchronous>, transform_indices = @transform_3, window_bounds = array<i64: 1, 32>}, {pipeline_mode = #tpu.pipeline_mode<synchronous>, transform_indices = @transform_4, window_bounds = array<i64: 32, 32>}, {pipeline_mode = #tpu.pipeline_mode<synchronous>, transform_indices = @transform_5, window_bounds = array<i64: 1, 32>}, {pipeline_mode = #tpu.pipeline_mode<synchronous>, transform_indices = @transform_6, window_bounds = array<i64: 32, 4>}, {pipeline_mode = #tpu.pipeline_mode<synchronous>, transform_indices = @transform_7, window_bounds = array<i64: 1, 4>}, {pipeline_mode = #tpu.pipeline_mode<synchronous>, transform_indices = @transform_8, window_bounds = array<i64: 1, 4>}, {transform_indices = @transform_9, window_bounds = array<i64: 8, 4>}]} {
    %c0 = arith.constant 0 : index
    %c0_0 = arith.constant 0 : index
    %0 = vector.load %arg1[%c0, %c0_0] : memref<8x16xf32, #tpu.memory_space<vmem>>, vector<8x16xf32>
    %c0_1 = arith.constant 0 : index
    %c0_2 = arith.constant 0 : index
    %1 = vector.load %arg3[%c0_1, %c0_2] : memref<16x32xf32, #tpu.memory_space<vmem>>, vector<16x32xf32>
    %cst = arith.constant dense<0.000000e+00> : vector<8x32xf32>
    %2 = tpu.matmul %0, %1, %cst {dimension_numbers = #tpu.dot_dimension_numbers<[1], [0], [0], [1], [0, 0, 1, 1], [], []>} : vector<8x16xf32>, vector<16x32xf32>, vector<8x32xf32> -> vector<8x32xf32>
    %c0_3 = arith.constant 0 : index
    %c0_4 = arith.constant 0 : index
    %3 = vector.load %arg4[%c0_3, %c0_4] : memref<1x32xf32, #tpu.memory_space<vmem>>, vector<1x32xf32>
    %4 = vector.broadcast %3 : vector<1x32xf32> to vector<8x32xf32>
    %5 = arith.addf %2, %4 : vector<8x32xf32>
    %6 = math.tanh %5 : vector<8x32xf32>
    %c0_5 = arith.constant 0 : index
    %c0_6 = arith.constant 0 : index
    %7 = vector.load %arg5[%c0_5, %c0_6] : memref<32x32xf32, #tpu.memory_space<vmem>>, vector<32x32xf32>
    %cst_7 = arith.constant dense<0.000000e+00> : vector<8x32xf32>
    %8 = tpu.matmul %6, %7, %cst_7 {dimension_numbers = #tpu.dot_dimension_numbers<[1], [0], [0], [1], [0, 0, 1, 1], [], []>} : vector<8x32xf32>, vector<32x32xf32>, vector<8x32xf32> -> vector<8x32xf32>
    %c0_8 = arith.constant 0 : index
    %c0_9 = arith.constant 0 : index
    %9 = vector.load %arg6[%c0_8, %c0_9] : memref<1x32xf32, #tpu.memory_space<vmem>>, vector<1x32xf32>
    %10 = vector.broadcast %9 : vector<1x32xf32> to vector<8x32xf32>
    %11 = arith.addf %8, %10 : vector<8x32xf32>
    %12 = math.tanh %11 : vector<8x32xf32>
    %c0_10 = arith.constant 0 : index
    %c0_11 = arith.constant 0 : index
    %13 = vector.load %arg7[%c0_10, %c0_11] : memref<32x4xf32, #tpu.memory_space<vmem>>, vector<32x4xf32>
    %cst_12 = arith.constant dense<0.000000e+00> : vector<8x4xf32>
    %14 = tpu.matmul %12, %13, %cst_12 {dimension_numbers = #tpu.dot_dimension_numbers<[1], [0], [0], [1], [0, 0, 1, 1], [], []>} : vector<8x32xf32>, vector<32x4xf32>, vector<8x4xf32> -> vector<8x4xf32>
    %c0_13 = arith.constant 0 : index
    %c0_14 = arith.constant 0 : index
    %15 = vector.load %arg8[%c0_13, %c0_14] : memref<1x4xf32, #tpu.memory_space<vmem>>, vector<1x4xf32>
    %16 = vector.broadcast %15 : vector<1x4xf32> to vector<8x4xf32>
    %17 = arith.addf %14, %16 : vector<8x4xf32>
    %c0_15 = arith.constant 0 : index
    %c0_16 = arith.constant 0 : index
    %18 = vector.load %arg9[%c0_15, %c0_16] : memref<1x4xf32, #tpu.memory_space<vmem>>, vector<1x4xf32>
    %c0_17 = arith.constant 0 : index
    %c0_18 = arith.constant 0 : index
    %19 = vector.load %arg2[%c0_17, %c0_18] : memref<8x4xf32, #tpu.memory_space<vmem>>, vector<8x4xf32>
    %20 = vector.broadcast %18 : vector<1x4xf32> to vector<8x4xf32>
    %21 = arith.mulf %20, %19 : vector<8x4xf32>
    %22 = arith.addf %17, %21 : vector<8x4xf32>
    %c0_19 = arith.constant 0 : index
    %c0_20 = arith.constant 0 : index
    %23 = vector.load %arg10[%c0_19, %c0_20] : memref<8x4xf32, #tpu.memory_space<vmem>>, vector<8x4xf32>
    tpu.vector_store %arg10[%c0_19, %c0_20], %22 {strides = array<i32>} : memref<8x4xf32, #tpu.memory_space<vmem>>, vector<8x4xf32>,
    return
  }
  func.func @transform_0(%arg0: i32) -> (i32, i32) {
    %c0_i32 = arith.constant 0 : i32
    %c0_i32_0 = arith.constant 0 : i32
    return %arg0, %c0_i32 : i32, i32
  }
  func.func @transform_1(%arg0: i32) -> (i32, i32) {
    %c0_i32 = arith.constant 0 : i32
    %c0_i32_0 = arith.constant 0 : i32
    return %arg0, %c0_i32 : i32, i32
  }
  func.func @transform_2(%arg0: i32) -> (i32, i32) {
    %c0_i32 = arith.constant 0 : i32
    %c0_i32_0 = arith.constant 0 : i32
    %c0_i32_1 = arith.constant 0 : i32
    return %c0_i32, %c0_i32_0 : i32, i32
  }
  func.func @transform_3(%arg0: i32) -> (i32, i32) {
    %c0_i32 = arith.constant 0 : i32
    %c0_i32_0 = arith.constant 0 : i32
    %c0_i32_1 = arith.constant 0 : i32
    return %c0_i32, %c0_i32_0 : i32, i32
  }
  func.func @transform_4(%arg0: i32) -> (i32, i32) {
    %c0_i32 = arith.constant 0 : i32
    %c0_i32_0 = arith.constant 0 : i32
    %c0_i32_1 = arith.constant 0 : i32
    return %c0_i32, %c0_i32_0 : i32, i32
  }
  func.func @transform_5(%arg0: i32) -> (i32, i32) {
    %c0_i32 = arith.constant 0 : i32
    %c0_i32_0 = arith.constant 0 : i32
    %c0_i32_1 = arith.constant 0 : i32
    return %c0_i32, %c0_i32_0 : i32, i32
  }
  func.func @transform_6(%arg0: i32) -> (i32, i32) {
    %c0_i32 = arith.constant 0 : i32
    %c0_i32_0 = arith.constant 0 : i32
    %c0_i32_1 = arith.constant 0 : i32
    return %c0_i32, %c0_i32_0 : i32, i32
  }
  func.func @transform_7(%arg0: i32) -> (i32, i32) {
    %c0_i32 = arith.constant 0 : i32
    %c0_i32_0 = arith.constant 0 : i32
    %c0_i32_1 = arith.constant 0 : i32
    return %c0_i32, %c0_i32_0 : i32, i32
  }
  func.func @transform_8(%arg0: i32) -> (i32, i32) {
    %c0_i32 = arith.constant 0 : i32
    %c0_i32_0 = arith.constant 0 : i32
    %c0_i32_1 = arith.constant 0 : i32
    return %c0_i32, %c0_i32_0 : i32, i32
  }
  func.func @transform_9(%arg0: i32) -> (i32, i32) {
    %c0_i32 = arith.constant 0 : i32
    %c0_i32_0 = arith.constant 0 : i32
    return %arg0, %c0_i32 : i32, i32
  }
}

</mosaic_0001>

<llo_original>
// kernel: tpu_custom_call.1
$region0: #{tpu_custom_call.1}
  #allocation0 [shape = 'u32[]', space=smem, size = 0x4, offset = 0x4, fixed_abs, tag = 'smem constant byte address 0x4 - core index']
  #allocation1 [shape = 'u32[72,128]{1,0:T(1,128)}', space=vmem, size = 0x9000, scoped, tag = 'internal scratch']
  %s0 = inlined_call_operand.vmem [shape: f32[8,16], index: 0, kind: input, shape index: {}]
  %s1 = inlined_call_operand.vmem [shape: f32[8,4], index: 1, kind: input, shape index: {}]
  %s2 = inlined_call_operand.hbm [shape: f32[16,32], index: 2, kind: input, shape index: {}]
  %s3 = inlined_call_operand.vmem [shape: f32[1,32], index: 3, kind: input, shape index: {}]
  %s4 = inlined_call_operand.vmem [shape: f32[32,32], index: 4, kind: input, shape index: {}]
  %s5 = inlined_call_operand.vmem [shape: f32[1,32], index: 5, kind: input, shape index: {}]
  %s6 = inlined_call_operand.vmem [shape: f32[32,4], index: 6, kind: input, shape index: {}]
  %s7 = inlined_call_operand.vmem [shape: f32[1,4], index: 7, kind: input, shape index: {}]
  %s8 = inlined_call_operand.vmem [shape: f32[1,4], index: 8, kind: input, shape index: {}]
  %s9 = inlined_call_operand.vmem [shape: f32[8,4], index: 9, kind: output, shape index: {}]
  %s10 = sld [smem:[#allocation0]]
  $region50: #{tpu_custom_call.1} parent=0
    _
  %s12 = ssub.s32 1, %s10
  %s13 = scalar_select 0, %s12, %s10
  $region1: #{tpu_custom_call.1} parent=0
    #allocation2 [shape = 'u8[8192]{0}', space=vmem, size = 0x2000, scoped, tag = 'input window, operand 2, single buffered']
    #allocation3 [shape = 's32[1]{0}', space=sflag, size = 0x4, scoped, tag = 'scoped memory for tpu_custom_call.1']
    %14 = vsyncpa [#allocation3], 0
    // Predicated region
    $region2: #{tpu_custom_call.1} parent=1 // pred_check
      _
    $region3: #{tpu_custom_call.1} parent=1 // pred_check_branch
      %16 = sbr.rel (0) target = $region5
    $region4: #{tpu_custom_call.1} parent=1 // pred_region
      _
    $region5: #{tpu_custom_call.1} parent=1 // pred_fallthru
      _
    // Predicated region
    $region6: #{tpu_custom_call.1} parent=1 // pred_check
      _
    $region7: #{tpu_custom_call.1} parent=1 // pred_check_branch
      %18 = sbr.rel (0) target = $region9
    $region8: #{tpu_custom_call.1} parent=1 // pred_region
      _
    $region9: #{tpu_custom_call.1} parent=1 // pred_fallthru
      _
    // Predicated region
    $region10: #{tpu_custom_call.1} parent=1 // pred_check
      _
    $region11: #{tpu_custom_call.1} parent=1 // pred_check_branch
      %20 = sbr.rel (0) target = $region13
    $region12: #{tpu_custom_call.1} parent=1 // pred_region
      %22 = vsyncadd [#allocation3], 0
      %s23 = sshll.u32 %s2, 4
      %s24 = int_to_ptr.hbm [resolvable:$true] %s23
      %s25 = sshll.u32 [#allocation2], 4
      %s26 = int_to_ptr.vmem [resolvable:$true] %s25
      %31 = dma.hbm_to_vmem [thread:$0]  %s24, 256, %s26, [#allocation3], 128, 128, 8
    $region13: #{tpu_custom_call.1} parent=1 // pred_fallthru
      _
    // Predicated region
    $region14: #{tpu_custom_call.1} parent=1 // pred_check
      _
    $region15: #{tpu_custom_call.1} parent=1 // pred_check_branch
      %33 = sbr.rel (0) target = $region17
    $region16: #{tpu_custom_call.1} parent=1 // pred_region
      _
    $region17: #{tpu_custom_call.1} parent=1 // pred_fallthru
      _
    // Predicated region
    $region18: #{tpu_custom_call.1} parent=1 // pred_check
      _
    $region19: #{tpu_custom_call.1} parent=1 // pred_check_branch
      %35 = sbr.rel (0) target = $region21
    $region20: #{tpu_custom_call.1} parent=1 // pred_region
      _
    $region21: #{tpu_custom_call.1} parent=1 // pred_fallthru
      _
    // Predicated region
    $region22: #{tpu_custom_call.1} parent=1 // pred_check
      _
    $region23: #{tpu_custom_call.1} parent=1 // pred_check_branch
      %37 = sbr.rel (0) target = $region25
    $region24: #{tpu_custom_call.1} parent=1 // pred_region
      _
    $region25: #{tpu_custom_call.1} parent=1 // pred_fallthru
      _
    // Predicated region
    $region26: #{tpu_custom_call.1} parent=1 // pred_check
      _
    $region27: #{tpu_custom_call.1} parent=1 // pred_check_branch
      %39 = sbr.rel (0) target = $region29
    $region28: #{tpu_custom_call.1} parent=1 // pred_region
      _
    $region29: #{tpu_custom_call.1} parent=1 // pred_fallthru
      _
    // Predicated region
    $region30: #{tpu_custom_call.1} parent=1 // pred_check
      _
    $region31: #{tpu_custom_call.1} parent=1 // pred_check_branch
      %41 = sbr.rel (0) target = $region33
    $region32: #{tpu_custom_call.1} parent=1 // pred_region
      _
    $region33: #{tpu_custom_call.1} parent=1 // pred_fallthru
      _
    // Predicated region
    $region34: #{tpu_custom_call.1} parent=1 // pred_check
      _
    $region35: #{tpu_custom_call.1} parent=1 // pred_check_branch
      %43 = sbr.rel (0) target = $region37
    $region36: #{tpu_custom_call.1} parent=1 // pred_region
      _
    $region37: #{tpu_custom_call.1} parent=1 // pred_fallthru
      _
    // Predicated region
    $region38: #{tpu_custom_call.1} parent=1 // pred_check
      _
    $region39: #{tpu_custom_call.1} parent=1 // pred_check_branch
      %45 = sbr.rel (0) target = $region41
    $region40: #{tpu_custom_call.1} parent=1 // pred_region
      %47 = dma.done [#allocation3], 256
    $region41: #{tpu_custom_call.1} parent=1 // pred_fallthru
      _
    %v48 = vld [vmem:[%s0] sm:$0xff]
    %v49 = vld [vmem:[#allocation2] sm:$0xff]
    %v50 = vld [vmem:[#allocation2 + $0x8] sm:$0xff]
    %v51 = vld [vmem:[%s3] sm:$0x1]
    %v53 = vperm.slane %v51, 0
    %vm55 = vcmask 130048
    %v57 = vsel %vm55, %v48, 0
    %59 = vmatpush.msra.mxu0 0.0
    %60 = vmatpush.msra.mxu0 0.0
    %61 = vmatpush.msra.mxu0 0.0
    %62 = vmatpush.msra.mxu0 0.0
    %63 = vmatpush.msra.mxu0 0.0
    %64 = vmatpush.msra.mxu0 0.0
    %65 = vmatpush.msra.mxu0 0.0
    %66 = vmatpush.msra.mxu0 0.0
    %67 = vmatpush.msra.mxu0 0.0
    %68 = vmatpush.msra.mxu0 0.0
    %69 = vmatpush.msra.mxu0 0.0
    %70 = vmatpush.msra.mxu0 0.0
    %71 = vmatpush.msra.mxu0 0.0
    %72 = vmatpush.msra.mxu0 0.0
    %73 = vmatpush.msra.mxu0 %v50
    %74 = vmatpush.msra.mxu0 %v49
    %75 = vmatmul.f32.gmra.mxu0 %v57
    %v76 = vpop.f32.mrf.mxu0
    %v77 = vadd.f32 %v53, %v76
    %78 = vdwg.mxu0
    %v79 = vtanh.pop %v77
    %v80 = vld [vmem:[%s4] sm:$0xff]
    %v81 = vld [vmem:[%s4 + $0x8] sm:$0xff]
    %v82 = vld [vmem:[%s4 + $0x10] sm:$0xff]
    %v83 = vld [vmem:[%s4 + $0x18] sm:$0xff]
    %v84 = vld [vmem:[%s5] sm:$0x1]
    %v86 = vperm.slane %v84, 0
    %vm88 = vcmask 261120
    %v90 = vsel %vm88, %v79, 0
    %92 = vmatpush.msra.mxu0 0.0
    %93 = vmatpush.msra.mxu0 0.0
    %94 = vmatpush.msra.mxu0 0.0
    %95 = vmatpush.msra.mxu0 0.0
    %96 = vmatpush.msra.mxu0 0.0
    %97 = vmatpush.msra.mxu0 0.0
    %98 = vmatpush.msra.mxu0 0.0
    %99 = vmatpush.msra.mxu0 0.0
    %100 = vmatpush.msra.mxu0 0.0
    %101 = vmatpush.msra.mxu0 0.0
    %102 = vmatpush.msra.mxu0 0.0
    %103 = vmatpush.msra.mxu0 0.0
    %104 = vmatpush.msra.mxu0 %v83
    %105 = vmatpush.msra.mxu0 %v82
    %106 = vmatpush.msra.mxu0 %v81
    %107 = vmatpush.msra.mxu0 %v80
    %108 = vmatmul.f32.gmra.mxu0 %v90
    %v109 = vpop.f32.mrf.mxu0
    %v110 = vadd.f32 %v86, %v109
    %111 = vdwg.mxu0
    %v112 = vtanh.pop %v110
    %v113 = vld [vmem:[%s6] sm:$0xff]
    %v114 = vld [vmem:[%s6 + $0x8] sm:$0xff]
    %v115 = vld [vmem:[%s6 + $0x10] sm:$0xff]
    %v116 = vld [vmem:[%s6 + $0x18] sm:$0xff]
    %v117 = vld [vmem:[%s7] sm:$0x1]
    %v119 = vperm.slane %v117, 0
    %v122 = vsel %vm88, %v112, 0
    %124 = vmatpush.msra.mxu0 0.0
    %125 = vmatpush.msra.mxu0 0.0
    %126 = vmatpush.msra.mxu0 0.0
    %127 = vmatpush.msra.mxu0 0.0
    %128 = vmatpush.msra.mxu0 0.0
    %129 = vmatpush.msra.mxu0 0.0
    %130 = vmatpush.msra.mxu0 0.0
    %131 = vmatpush.msra.mxu0 0.0
    %132 = vmatpush.msra.mxu0 0.0
    %133 = vmatpush.msra.mxu0 0.0
    %134 = vmatpush.msra.mxu0 0.0
    %135 = vmatpush.msra.mxu0 0.0
    %136 = vmatpush.msra.mxu0 %v116
    %137 = vmatpush.msra.mxu0 %v115
    %138 = vmatpush.msra.mxu0 %v114
    %139 = vmatpush.msra.mxu0 %v113
    %140 = vmatmul.f32.gmra.mxu0 %v122
    %v141 = vpop.f32.mrf.mxu0
    %v142 = vadd.f32 %v119, %v141
    %143 = vdwg.mxu0
    %v144 = vld [vmem:[%s8] sm:$0x1]
    %v145 = vld [vmem:[%s1] sm:$0xff]
    %v147 = vperm.slane %v144, 0
    %v149 = vmul.f32 %v147, %v145
    %v150 = vadd.f32 %v142, %v149
    %vm151 = vcmask 31744
    %152 = vst.msk [vmem:[%s9] sm:$0xff] %vm151, %v150
    // Predicated region
    $region42: #{tpu_custom_call.1} parent=1 // pred_check
      _
    $region43: #{tpu_custom_call.1} parent=1 // pred_check_branch
      %154 = sbr.rel (0) target = $region45
    $region44: #{tpu_custom_call.1} parent=1 // pred_region
      _
    $region45: #{tpu_custom_call.1} parent=1 // pred_fallthru
      _
    // Predicated region
    $region46: #{tpu_custom_call.1} parent=1 // pred_check
      _
    $region47: #{tpu_custom_call.1} parent=1 // pred_check_branch
      %156 = sbr.rel (0) target = $region49
    $region48: #{tpu_custom_call.1} parent=1 // pred_region
      _
    $region49: #{tpu_custom_call.1} parent=1 // pred_fallthru
      _
    %157 = vsyncpa [#allocation3], 1

</llo_original>
